<compile_context>
chip_gen: v7x
topology: tpu7x:2x2x1
jax: 0.10.0
libtpu: 0.0.40
codegen_flags: <defaults>
</compile_context>

<pallas_src>
import functools
import math

import numpy as np
import jax
import jax.numpy as jnp
from jax.experimental import pallas as pl
from jax.experimental.pallas import tpu as pltpu


# ----------------------------------------------------------------------------
# PyTorch-exact bicubic x2 interpolation matrix (per axis), cached per size.
# ----------------------------------------------------------------------------
@functools.lru_cache(maxsize=None)
def bicubic_x2_matrix(in_size: int) -> np.ndarray:
    """(2*in_size, in_size) matrix reproducing F.interpolate(scale_factor=2,
    mode='bicubic', align_corners=False): a=-0.75, edge-clamped taps."""
    a = -0.75
    out_size = 2 * in_size
    dst = np.arange(out_size, dtype=np.float64)
    src = (dst + 0.5) / 2.0 - 0.5
    f = np.floor(src)
    t = src - f
    x0, x1, x2, x3 = 1.0 + t, t, 1.0 - t, 2.0 - t
    w0 = a * x0**3 - 5.0 * a * x0**2 + 8.0 * a * x0 - 4.0 * a
    w1 = (a + 2.0) * x1**3 - (a + 3.0) * x1**2 + 1.0
    w2 = (a + 2.0) * x2**3 - (a + 3.0) * x2**2 + 1.0
    w3 = a * x3**3 - 5.0 * a * x3**2 + 8.0 * a * x3 - 4.0 * a
    M = np.zeros((out_size, in_size), dtype=np.float64)
    base = f.astype(np.int64)
    for k, w in zip((-1, 0, 1, 2), (w0, w1, w2, w3)):
        idx = np.clip(base + k, 0, in_size - 1)
        np.add.at(M, (np.arange(out_size), idx), w)
    return M.astype(np.float32)
# TODO(synk): cross-check bicubic_x2_matrix against torch.nn.functional.interpolate offline.


# ----------------------------------------------------------------------------
# Pallas kernel: fused (1x1 conv x width-upsample) matmul, height matmul, and
# NCHW store folded into the kernel.
# ----------------------------------------------------------------------------
def upsample_conv_kernel(x_ref, m1_ref, uh_ref, b_ref, o_ref):
    # x_ref : (Nb, H, Kp)           compute dtype; Kp = round_up(C_in*W, 128)
    # m1_ref: (Kp, C_out*2W)        fused 1x1-conv (x) width-upsample operator
    # uh_ref: (2H, H)               height-upsample operator
    # b_ref : (1, C_out*2W)         lane-dense bias (f32)
    # o_ref : (Nb, C_out, 2H, 2W)   NCHW output block
    Nb, H, Kp = x_ref.shape
    _, C_out, H2, W2 = o_ref.shape
    cdt = x_ref.dtype
    sub = 32 // jnp.dtype(cdt).itemsize       # sublane packing: 8 (f32) / 16 (bf16)

    m1 = m1_ref[...]
    uh = uh_ref[...]
    # Grid-invariant bias broadcast, hoisted out of the image loop.
    bias = jnp.broadcast_to(b_ref[...], (H2, C_out * W2))

    # Stage 1: fused (1x1 conv x width upsample).  Fold (Nb, H) into M of a
    # single rank-2 MXU matmul when the sublane regroup is aligned.
    fused = (H % sub == 0)
    if fused:
        t1_all = jnp.dot(x_ref[...].reshape(Nb * H, Kp), m1,
                         preferred_element_type=jnp.float32).astype(cdt)

    for b in range(Nb):                        # static unroll; rank-2 dots only
        if fused:
            t1_b = t1_all[b * H:(b + 1) * H, :]
        else:
            t1_b = jnp.dot(x_ref[b], m1,
                           preferred_element_type=jnp.float32).astype(cdt)
        # Stage 2: height upsample with the un-batched operator (no broadcast).
        t2 = jnp.dot(uh, t1_b, preferred_element_type=jnp.float32) + bias
        # NCHW store: per-channel lane slices of the (2H, C_out*2W) f32 tile.
        for o in range(C_out):
            o_ref[b, o, :, :] = t2[:, o * W2:(o + 1) * W2].astype(o_ref.dtype)


# ----------------------------------------------------------------------------
# Block sizing helpers (generation aware).
# ----------------------------------------------------------------------------
def _round_up(x, m):
    return ((x + m - 1) // m) * m


def _vmem_capacity_bytes() -> int:
    try:
        return int(pltpu.get_tpu_info().vmem_capacity_bytes)
    except Exception:
        return 64 << 20            # conservative (v7x per-TensorCore VMEM)


def _pick_images_per_block(N, per_img_bytes, invariant_bytes, block_budget, H):
    """Images per grid step: target ~512 M-rows in the fused stage-1 matmul,
    fit the double-buffered block + invariants in the budget, keep >= 2 grid
    steps when N >= 2 (pipeline overlap + both v7x cores), prefer minimal
    batch padding and an even step count."""
    row_target = 512
    nb_rows = max(1, row_target // max(H, 1))
    nb_mem = max(1, int((block_budget - 2 * invariant_bytes)
                        // max(1, 2 * per_img_bytes)))
    nb_cap = max(1, min(nb_rows, nb_mem, N))
    best, best_key = 1, None
    for nb in range(1, nb_cap + 1):
        steps = -(-N // nb)
        if N >= 2 and steps < 2:
            continue
        waste = steps * nb - N
        key = (waste, steps % 2, -nb)   # min padding, even steps, then max nb
        if best_key is None or key < best_key:
            best, best_key = nb, key
    return best


# ----------------------------------------------------------------------------
# Wrapper (jit'ed so the layout fold / casts / pads fuse into one pass).
# ----------------------------------------------------------------------------
@functools.partial(jax.jit, static_argnames=("compute_dtype",))
def upsample_forward(x, conv_w, conv_b, *, compute_dtype=jnp.bfloat16):
    """Bicubic x2 upsample (PyTorch semantics, align_corners=False) + 1x1 Conv2d.
    x: (N, C_in, H, W) -> (N, C_out, 2H, 2W); output dtype == x.dtype.
    NOTE: the default bf16 path downcasts the interpolation operators (~5e-2
    abs error vs PyTorch); pass compute_dtype=jnp.float32 for exact results."""
    N, C_in, H, W = x.shape
    C_out = conv_w.shape[0]
    H2, W2 = 2 * H, 2 * W
    cdt = jnp.dtype(compute_dtype)
    odt = jnp.dtype(x.dtype)

    K = C_in * W
    Kp = _round_up(K, 128)         # lane-align K: unmasked vld + full MXU K-fill

    uw = jnp.asarray(bicubic_x2_matrix(W))        # (2W, W) f32
    uh = jnp.asarray(bicubic_x2_matrix(H))        # (2H, H) f32

    # Fuse the 1x1 conv into the width upsample:
    #   m1[c*W + w, o*2W + w2] = conv_w[o, c] * uw[w2, w]; zero rows pad K->Kp.
    w2d = conv_w.reshape(C_out, C_in).astype(jnp.float32)
    m1 = jnp.einsum('oc,vw->cwov', w2d, uw).reshape(K, C_out * W2)
    if Kp != K:
        m1 = jnp.pad(m1, ((0, Kp - K), (0, 0)))

    # Lane-dense bias tile (f32), added to the f32 accumulator in-kernel.
    b_tile = jnp.broadcast_to(conv_b.astype(jnp.float32)[:, None],
                              (C_out, W2)).reshape(1, C_out * W2)

    # NCHW -> (N, H, C_in*W) with zero lane padding to Kp (fused under jit).
    x_k = jnp.transpose(x, (0, 2, 1, 3)).reshape(N, H, K).astype(cdt)
    if Kp != K:
        x_k = jnp.pad(x_k, ((0, 0), (0, 0), (0, Kp - K)))

    # ---- generation-aware block sizing --------------------------------------
    vmem_cap = _vmem_capacity_bytes()
    if vmem_cap <= (64 << 20):                    # v7x: 64 MiB VMEM per core
        block_budget, vmem_limit = 12 << 20, 48 << 20
    else:                                         # v5e / v6e: 128 MiB VMEM
        block_budget, vmem_limit = 20 << 20, 64 << 20

    per_img = (H * Kp * cdt.itemsize                  # x block
               + C_out * H2 * W2 * odt.itemsize       # output block
               + H * C_out * W2 * cdt.itemsize        # stage-1 intermediate
               + H2 * C_out * W2 * 4)                 # stage-2 f32 tile
    m1_bytes = Kp * C_out * W2 * cdt.itemsize
    invariants = (m1_bytes + H2 * H * cdt.itemsize
                  + (1 + H2) * C_out * W2 * 4)

    Nb = _pick_images_per_block(N, per_img, invariants, block_budget, H)
    steps = -(-N // Nb)
    Np = steps * Nb
    if Np != N:                                   # pad batch: grid = cdiv(N, Nb)
        x_k = jnp.pad(x_k, ((0, Np - N), (0, 0), (0, 0)))

    # Grid-invariant operands: single-buffer the fused operator when it is big
    # (VMEM relief on v7x); small operands keep default double buffering.
    if m1_bytes > (4 << 20):
        m1_spec = pl.BlockSpec((Kp, C_out * W2), lambda n: (0, 0),
                               pipeline_mode=pl.Buffered(1))
    else:
        m1_spec = pl.BlockSpec((Kp, C_out * W2), lambda n: (0, 0))

    out = pl.pallas_call(
        upsample_conv_kernel,
        out_shape=jax.ShapeDtypeStruct((Np, C_out, H2, W2), odt),
        grid_spec=pltpu.PrefetchScalarGridSpec(
            num_scalar_prefetch=0,
            grid=(steps,),
            in_specs=[
                pl.BlockSpec((Nb, H, Kp), lambda n: (n, 0, 0)),
                m1_spec,
                pl.BlockSpec((H2, H), lambda n: (0, 0)),
                pl.BlockSpec((1, C_out * W2), lambda n: (0, 0)),
            ],
            out_specs=pl.BlockSpec((Nb, C_out, H2, W2),
                                   lambda n: (n, 0, 0, 0)),
        ),
        compiler_params=pltpu.CompilerParams(
            dimension_semantics=("parallel",),
            vmem_limit_bytes=vmem_limit),
    )(x_k, m1.astype(cdt), uh.astype(cdt), b_tile)

    return out[:N] if Np != N else out


# ----------------------------------------------------------------------------
# Pure-JAX reference (separable bicubic, then 1x1 conv) for validation.
# ----------------------------------------------------------------------------
def reference_forward(x, conv_w, conv_b):
    N, C_in, H, W = x.shape
    C_out = conv_w.shape[0]
    uh = jnp.asarray(bicubic_x2_matrix(H))
    uw = jnp.asarray(bicubic_x2_matrix(W))
    up = jnp.einsum('Hh,nchw->ncHw', uh, x)
    up = jnp.einsum('Ww,ncHw->ncHW', uw, up)
    w2d = conv_w.reshape(C_out, C_in)
    return jnp.einsum('oc,ncHW->noHW', w2d, up) + conv_b[None, :, None, None]


if __name__ == "__main__":
    N, C_in, C_out, H, W = 2, 4, 8, 16, 16

    key = jax.random.PRNGKey(0)
    kx, kw, kb = jax.random.split(key, 3)

    x = jax.random.normal(kx, (N, C_in, H, W), dtype=jnp.float32)
    bound = 1.0 / math.sqrt(C_in)   # PyTorch Conv2d(k=1) default init bounds
    conv_w = jax.random.uniform(kw, (C_out, C_in, 1, 1),
                                minval=-bound, maxval=bound, dtype=jnp.float32)
    conv_b = jax.random.uniform(kb, (C_out,),
                                minval=-bound, maxval=bound, dtype=jnp.float32)

    # Sanity on the interpolation operator: Keys cubic taps sum to 1 per row.
    for size in (H, W):
        M = bicubic_x2_matrix(size)
        assert np.allclose(M.sum(axis=1), 1.0, atol=1e-6), "bicubic rows != 1"

    ref = jax.block_until_ready(reference_forward(x, conv_w, conv_b))

    # f32 compute path: strict check against the PyTorch-exact reference.
    out_f32 = jax.block_until_ready(
        upsample_forward(x, conv_w, conv_b, compute_dtype=jnp.float32))
    assert out_f32.shape == (N, C_out, 2 * H, 2 * W)
    assert np.allclose(np.asarray(out_f32), np.asarray(ref),
                       atol=1e-4, rtol=1e-4), "f32 kernel mismatch"

    # Default bf16-operand path (f32 MXU accumulation): loose check.
    out_bf16 = jax.block_until_ready(upsample_forward(x, conv_w, conv_b))
    assert out_bf16.shape == (N, C_out, 2 * H, 2 * W)
    assert np.allclose(np.asarray(out_bf16), np.asarray(ref),
                       atol=5e-2, rtol=5e-2), "bf16 kernel mismatch"

    print("KERNEL_OK")
</pallas_src>

<mosaic_0001>
module attributes {stable_mosaic.version = 11 : i64} {
  func.func @upsample_conv_kernel(%arg0: i32, %arg1: memref<1x16x128xf32, #tpu.memory_space<vmem>>, %arg2: memref<128x256xf32, #tpu.memory_space<vmem>>, %arg3: memref<32x16xf32, #tpu.memory_space<vmem>>, %arg4: memref<1x256xf32, #tpu.memory_space<vmem>>, %arg5: memref<1x8x32x32xf32, #tpu.memory_space<vmem>>) attributes {dimension_semantics = [#tpu.dimension_semantics<parallel>], iteration_bounds = array<i64: 2>, scalar_prefetch = 0 : i64, scratch_operands = 0 : i64, tpu.core_type = #tpu.core_type<tc>, window_params = [{transform_indices = @transform_0, window_bounds = array<i64: 1, 16, 128>}, {pipeline_mode = #tpu.pipeline_mode<synchronous>, transform_indices = @transform_1, window_bounds = array<i64: 128, 256>}, {pipeline_mode = #tpu.pipeline_mode<synchronous>, transform_indices = @transform_2, window_bounds = array<i64: 32, 16>}, {pipeline_mode = #tpu.pipeline_mode<synchronous>, transform_indices = @transform_3, window_bounds = array<i64: 1, 256>}, {transform_indices = @transform_4, window_bounds = array<i64: 1, 8, 32, 32>}]} {
    %c0 = arith.constant 0 : index
    %c0_0 = arith.constant 0 : index
    %0 = vector.load %arg2[%c0, %c0_0] : memref<128x256xf32, #tpu.memory_space<vmem>>, vector<128x256xf32>
    %c0_1 = arith.constant 0 : index
    %c0_2 = arith.constant 0 : index
    %1 = vector.load %arg3[%c0_1, %c0_2] : memref<32x16xf32, #tpu.memory_space<vmem>>, vector<32x16xf32>
    %c0_3 = arith.constant 0 : index
    %c0_4 = arith.constant 0 : index
    %2 = vector.load %arg4[%c0_3, %c0_4] : memref<1x256xf32, #tpu.memory_space<vmem>>, vector<1x256xf32>
    %3 = vector.shape_cast %2 : vector<1x256xf32> to vector<1x256xf32>
    %4 = vector.broadcast %3 : vector<1x256xf32> to vector<32x256xf32>
    %c0_5 = arith.constant 0 : index
    %c0_6 = arith.constant 0 : index
    %c0_7 = arith.constant 0 : index
    %5 = vector.load %arg1[%c0_5, %c0_6, %c0_7] : memref<1x16x128xf32, #tpu.memory_space<vmem>>, vector<1x16x128xf32>
    %6 = vector.shape_cast %5 : vector<1x16x128xf32> to vector<16x128xf32>
    %cst = arith.constant dense<0.000000e+00> : vector<16x256xf32>
    %7 = tpu.matmul %6, %0, %cst {dimension_numbers = #tpu.dot_dimension_numbers<[1], [0], [0], [1], [0, 0, 1, 1], [], []>} : vector<16x128xf32>, vector<128x256xf32>, vector<16x256xf32> -> vector<16x256xf32>
    %cst_8 = arith.constant dense<0.000000e+00> : vector<32x256xf32>
    %8 = tpu.matmul %1, %7, %cst_8 {dimension_numbers = #tpu.dot_dimension_numbers<[1], [0], [0], [1], [0, 0, 1, 1], [], []>} : vector<32x16xf32>, vector<16x256xf32>, vector<32x256xf32> -> vector<32x256xf32>
    %9 = arith.addf %8, %4 : vector<32x256xf32>
    %10 = vector.extract_strided_slice %9 {offsets = [0, 0], sizes = [32, 32], strides = [1, 1]} : vector<32x256xf32> to vector<32x32xf32>
    %c0_9 = arith.constant 0 : index
    %c0_10 = arith.constant 0 : index
    %c0_11 = arith.constant 0 : index
    %c0_12 = arith.constant 0 : index
    %11 = vector.load %arg5[%c0_9, %c0_10, %c0_11, %c0_12] : memref<1x8x32x32xf32, #tpu.memory_space<vmem>>, vector<1x1x32x32xf32>
    %12 = vector.shape_cast %11 : vector<1x1x32x32xf32> to vector<32x32xf32>
    %13 = vector.shape_cast %10 : vector<32x32xf32> to vector<1x1x32x32xf32>
    tpu.vector_store %arg5[%c0_9, %c0_10, %c0_11, %c0_12], %13 {strides = array<i32>} : memref<1x8x32x32xf32, #tpu.memory_space<vmem>>, vector<1x1x32x32xf32>,
    %14 = vector.extract_strided_slice %9 {offsets = [0, 32], sizes = [32, 32], strides = [1, 1]} : vector<32x256xf32> to vector<32x32xf32>
    %c0_13 = arith.constant 0 : index
    %c1 = arith.constant 1 : index
    %c0_14 = arith.constant 0 : index
    %c0_15 = arith.constant 0 : index
    %15 = vector.load %arg5[%c0_13, %c1, %c0_14, %c0_15] : memref<1x8x32x32xf32, #tpu.memory_space<vmem>>, vector<1x1x32x32xf32>
    %16 = vector.shape_cast %15 : vector<1x1x32x32xf32> to vector<32x32xf32>
    %17 = vector.shape_cast %14 : vector<32x32xf32> to vector<1x1x32x32xf32>
    tpu.vector_store %arg5[%c0_13, %c1, %c0_14, %c0_15], %17 {strides = array<i32>} : memref<1x8x32x32xf32, #tpu.memory_space<vmem>>, vector<1x1x32x32xf32>,
    %18 = vector.extract_strided_slice %9 {offsets = [0, 64], sizes = [32, 32], strides = [1, 1]} : vector<32x256xf32> to vector<32x32xf32>
    %c0_16 = arith.constant 0 : index
    %c2 = arith.constant 2 : index
    %c0_17 = arith.constant 0 : index
    %c0_18 = arith.constant 0 : index
    %19 = vector.load %arg5[%c0_16, %c2, %c0_17, %c0_18] : memref<1x8x32x32xf32, #tpu.memory_space<vmem>>, vector<1x1x32x32xf32>
    %20 = vector.shape_cast %19 : vector<1x1x32x32xf32> to vector<32x32xf32>
    %21 = vector.shape_cast %18 : vector<32x32xf32> to vector<1x1x32x32xf32>
    tpu.vector_store %arg5[%c0_16, %c2, %c0_17, %c0_18], %21 {strides = array<i32>} : memref<1x8x32x32xf32, #tpu.memory_space<vmem>>, vector<1x1x32x32xf32>,
    %22 = vector.extract_strided_slice %9 {offsets = [0, 96], sizes = [32, 32], strides = [1, 1]} : vector<32x256xf32> to vector<32x32xf32>
    %c0_19 = arith.constant 0 : index
    %c3 = arith.constant 3 : index
    %c0_20 = arith.constant 0 : index
    %c0_21 = arith.constant 0 : index
    %23 = vector.load %arg5[%c0_19, %c3, %c0_20, %c0_21] : memref<1x8x32x32xf32, #tpu.memory_space<vmem>>, vector<1x1x32x32xf32>
    %24 = vector.shape_cast %23 : vector<1x1x32x32xf32> to vector<32x32xf32>
    %25 = vector.shape_cast %22 : vector<32x32xf32> to vector<1x1x32x32xf32>
    tpu.vector_store %arg5[%c0_19, %c3, %c0_20, %c0_21], %25 {strides = array<i32>} : memref<1x8x32x32xf32, #tpu.memory_space<vmem>>, vector<1x1x32x32xf32>,
    %26 = vector.extract_strided_slice %9 {offsets = [0, 128], sizes = [32, 32], strides = [1, 1]} : vector<32x256xf32> to vector<32x32xf32>
    %c0_22 = arith.constant 0 : index
    %c4 = arith.constant 4 : index
    %c0_23 = arith.constant 0 : index
    %c0_24 = arith.constant 0 : index
    %27 = vector.load %arg5[%c0_22, %c4, %c0_23, %c0_24] : memref<1x8x32x32xf32, #tpu.memory_space<vmem>>, vector<1x1x32x32xf32>
    %28 = vector.shape_cast %27 : vector<1x1x32x32xf32> to vector<32x32xf32>
    %29 = vector.shape_cast %26 : vector<32x32xf32> to vector<1x1x32x32xf32>
    tpu.vector_store %arg5[%c0_22, %c4, %c0_23, %c0_24], %29 {strides = array<i32>} : memref<1x8x32x32xf32, #tpu.memory_space<vmem>>, vector<1x1x32x32xf32>,
    %30 = vector.extract_strided_slice %9 {offsets = [0, 160], sizes = [32, 32], strides = [1, 1]} : vector<32x256xf32> to vector<32x32xf32>
    %c0_25 = arith.constant 0 : index
    %c5 = arith.constant 5 : index
    %c0_26 = arith.constant 0 : index
    %c0_27 = arith.constant 0 : index
    %31 = vector.load %arg5[%c0_25, %c5, %c0_26, %c0_27] : memref<1x8x32x32xf32, #tpu.memory_space<vmem>>, vector<1x1x32x32xf32>
    %32 = vector.shape_cast %31 : vector<1x1x32x32xf32> to vector<32x32xf32>
    %33 = vector.shape_cast %30 : vector<32x32xf32> to vector<1x1x32x32xf32>
    tpu.vector_store %arg5[%c0_25, %c5, %c0_26, %c0_27], %33 {strides = array<i32>} : memref<1x8x32x32xf32, #tpu.memory_space<vmem>>, vector<1x1x32x32xf32>,
    %34 = vector.extract_strided_slice %9 {offsets = [0, 192], sizes = [32, 32], strides = [1, 1]} : vector<32x256xf32> to vector<32x32xf32>
    %c0_28 = arith.constant 0 : index
    %c6 = arith.constant 6 : index
    %c0_29 = arith.constant 0 : index
    %c0_30 = arith.constant 0 : index
    %35 = vector.load %arg5[%c0_28, %c6, %c0_29, %c0_30] : memref<1x8x32x32xf32, #tpu.memory_space<vmem>>, vector<1x1x32x32xf32>
    %36 = vector.shape_cast %35 : vector<1x1x32x32xf32> to vector<32x32xf32>
    %37 = vector.shape_cast %34 : vector<32x32xf32> to vector<1x1x32x32xf32>
    tpu.vector_store %arg5[%c0_28, %c6, %c0_29, %c0_30], %37 {strides = array<i32>} : memref<1x8x32x32xf32, #tpu.memory_space<vmem>>, vector<1x1x32x32xf32>,
    %38 = vector.extract_strided_slice %9 {offsets = [0, 224], sizes = [32, 32], strides = [1, 1]} : vector<32x256xf32> to vector<32x32xf32>
    %c0_31 = arith.constant 0 : index
    %c7 = arith.constant 7 : index
    %c0_32 = arith.constant 0 : index
    %c0_33 = arith.constant 0 : index
    %39 = vector.load %arg5[%c0_31, %c7, %c0_32, %c0_33] : memref<1x8x32x32xf32, #tpu.memory_space<vmem>>, vector<1x1x32x32xf32>
    %40 = vector.shape_cast %39 : vector<1x1x32x32xf32> to vector<32x32xf32>
    %41 = vector.shape_cast %38 : vector<32x32xf32> to vector<1x1x32x32xf32>
    tpu.vector_store %arg5[%c0_31, %c7, %c0_32, %c0_33], %41 {strides = array<i32>} : memref<1x8x32x32xf32, #tpu.memory_space<vmem>>, vector<1x1x32x32xf32>,
    return
  }
  func.func @transform_0(%arg0: i32) -> (i32, i32, i32) {
    %c0_i32 = arith.constant 0 : i32
    %c0_i32_0 = arith.constant 0 : i32
    %c0_i32_1 = arith.constant 0 : i32
    return %arg0, %c0_i32, %c0_i32_0 : i32, i32, i32
  }
  func.func @transform_1(%arg0: i32) -> (i32, i32) {
    %c0_i32 = arith.constant 0 : i32
    %c0_i32_0 = arith.constant 0 : i32
    %c0_i32_1 = arith.constant 0 : i32
    return %c0_i32, %c0_i32_0 : i32, i32
  }
  func.func @transform_2(%arg0: i32) -> (i32, i32) {
    %c0_i32 = arith.constant 0 : i32
    %c0_i32_0 = arith.constant 0 : i32
    %c0_i32_1 = arith.constant 0 : i32
    return %c0_i32, %c0_i32_0 : i32, i32
  }
  func.func @transform_3(%arg0: i32) -> (i32, i32) {
    %c0_i32 = arith.constant 0 : i32
    %c0_i32_0 = arith.constant 0 : i32
    %c0_i32_1 = arith.constant 0 : i32
    return %c0_i32, %c0_i32_0 : i32, i32
  }
  func.func @transform_4(%arg0: i32) -> (i32, i32, i32, i32) {
    %c0_i32 = arith.constant 0 : i32
    %c0_i32_0 = arith.constant 0 : i32
    %c0_i32_1 = arith.constant 0 : i32
    %c0_i32_2 = arith.constant 0 : i32
    return %arg0, %c0_i32, %c0_i32_0, %c0_i32_1 : i32, i32, i32, i32
  }
}

</mosaic_0001>

<llo_original>
// kernel: upsample_forward.1
$region0: #{upsample_forward.1}
  #allocation0 [shape = 'u32[]', space=smem, size = 0x4, offset = 0x4, fixed_abs, tag = 'smem constant byte address 0x4 - core index']
  #allocation1 [shape = 'u32[144,128]{1,0:T(1,128)}', space=vmem, size = 0x12000, scoped, tag = 'internal scratch']
  %s0 = inlined_call_operand.vmem [shape: f32[2,16,128], index: 0, kind: input, shape index: {}]
  %s1 = inlined_call_operand.vmem [shape: f32[128,256], index: 1, kind: input, shape index: {}]
  %s2 = inlined_call_operand.vmem [shape: f32[32,16], index: 2, kind: input, shape index: {}]
  %s3 = inlined_call_operand.vmem [shape: f32[1,256], index: 3, kind: input, shape index: {}]
  %s4 = inlined_call_operand.hbm [shape: f32[2,8,32,32], index: 4, kind: output, shape index: {}]
  %s5 = sld [smem:[#allocation0]]
  $region49: #{upsample_forward.1} parent=0
    _
  %s7 = ssub.s32 1, %s5
  %s8 = scalar_select 0, %s7, %s5
  $region1: #{upsample_forward.1} parent=0
    #allocation2 [shape = 'u8[262144]{0}', space=vmem, size = 0x40000, scoped, tag = 'output window, operand 0']
    #allocation3 [shape = 's32[2]{0}', space=sflag, size = 0x8, scoped, tag = 'scoped memory for upsample_forward.1']
    %9 = vsyncpa [#allocation3], 0
    %s10 = scalar_lea.sflag [#allocation3], 1
    %11 = vsyncpa %s10, 0
    loop: start=0, step=1, limit=4
    $region2: #{upsample_forward.1} parent=1 // loop_pre_header
      _
    $region3: #{upsample_forward.1} parent=1 // loop_header
      %s13 = sphi 0, %s17
      %p14 = scmp.ge.s32.totalorder %s13, 4
      %s23 = sphi 0, %s25
      %s26 = sphi 0, %s23
      %s27 = sphi 0, %s26
      %s43 = sphi 0, %s27
      %s47 = sphi 0, %s47
      %s49 = sphi 0, %s47
      %s50 = sphi 0, %s49
      %s64 = sphi 0, %s50
      %s68 = sphi 0, %s68
      %s70 = sphi 0, %s68
      %s71 = sphi 0, %s70
      %s85 = sphi 0, %s71
      %s89 = sphi 0, %s89
      %s91 = sphi 0, %s89
      %s92 = sphi 0, %s91
      %s106 = sphi 0, %s92
      %s112 = sphi 0, %s114
      %s115 = sphi 0, %s112
      %s116 = sphi 0, %s115
      %s132 = sphi 0, %s116
    $region4: #{upsample_forward.1} parent=1 // loop_header_branch
      %16 = sbr.rel (%p14) target = $region8
    $region5: #{upsample_forward.1} parent=1 // loop_body
      %s18 = ssub.s32 %s13, 1
      %s19 = ssub.s32 %s13, 2
      %s20 = sadd.s32 %s13, 1
      %s21 = ssub.s32 %s13, %s20
      %p22 = scmp.eq.s32.totalorder %s21, 0
      %s24 = sadd.s32 %s23, 1
      %s25 = scalar_select %p22, %s23, %s24
      %p28 = pneg %p22
      %p29 = scmp.eq.s32.totalorder %s13, 1
      %p30 = por %p28, %p29
      %p31 = scmp.ne.s32.totalorder %s23, %s26
      %p32 = scmp.eq.s32.totalorder %s13, 0
      %p33 = por %p31, %p32
      %p34 = scmp.ne.s32.totalorder %s23, %s26
      %p35 = scmp.eq.s32.totalorder %s18, 1
      %p36 = por %p34, %p35
      %p37 = scmp.ne.s32.totalorder %s26, %s27
      %p38 = scmp.eq.s32.totalorder %s18, 0
      %p39 = por %p37, %p38
      %p40 = scmp.ne.s32.totalorder %s26, %s27
      %p41 = scmp.eq.s32.totalorder %s19, 1
      %p42 = por %p40, %p41
      %p44 = scmp.ne.s32.totalorder %s27, %s43
      %p45 = scmp.eq.s32.totalorder %s19, 0
      %p46 = por %p44, %p45
      %s48 = sadd.s32 %s47, 1
      %p51 = scmp.eq.s32.totalorder %s13, 1
      %p52 = scmp.ne.s32.totalorder %s47, %s49
      %p53 = scmp.eq.s32.totalorder %s13, 0
      %p54 = por %p52, %p53
      %p55 = scmp.ne.s32.totalorder %s47, %s49
      %p56 = scmp.eq.s32.totalorder %s18, 1
      %p57 = por %p55, %p56
      %p58 = scmp.ne.s32.totalorder %s49, %s50
      %p59 = scmp.eq.s32.totalorder %s18, 0
      %p60 = por %p58, %p59
      %p61 = scmp.ne.s32.totalorder %s49, %s50
      %p62 = scmp.eq.s32.totalorder %s19, 1
      %p63 = por %p61, %p62
      %p65 = scmp.ne.s32.totalorder %s50, %s64
      %p66 = scmp.eq.s32.totalorder %s19, 0
      %p67 = por %p65, %p66
      %s69 = sadd.s32 %s68, 1
      %p72 = scmp.eq.s32.totalorder %s13, 1
      %p73 = scmp.ne.s32.totalorder %s68, %s70
      %p74 = scmp.eq.s32.totalorder %s13, 0
      %p75 = por %p73, %p74
      %p76 = scmp.ne.s32.totalorder %s68, %s70
      %p77 = scmp.eq.s32.totalorder %s18, 1
      %p78 = por %p76, %p77
      %p79 = scmp.ne.s32.totalorder %s70, %s71
      %p80 = scmp.eq.s32.totalorder %s18, 0
      %p81 = por %p79, %p80
      %p82 = scmp.ne.s32.totalorder %s70, %s71
      %p83 = scmp.eq.s32.totalorder %s19, 1
      %p84 = por %p82, %p83
      %p86 = scmp.ne.s32.totalorder %s71, %s85
      %p87 = scmp.eq.s32.totalorder %s19, 0
      %p88 = por %p86, %p87
      %s90 = sadd.s32 %s89, 1
      %p93 = scmp.eq.s32.totalorder %s13, 1
      %p94 = scmp.ne.s32.totalorder %s89, %s91
      %p95 = scmp.eq.s32.totalorder %s13, 0
      %p96 = por %p94, %p95
      %p97 = scmp.ne.s32.totalorder %s89, %s91
      %p98 = scmp.eq.s32.totalorder %s18, 1
      %p99 = por %p97, %p98
      %p100 = scmp.ne.s32.totalorder %s91, %s92
      %p101 = scmp.eq.s32.totalorder %s18, 0
      %p102 = por %p100, %p101
      %p103 = scmp.ne.s32.totalorder %s91, %s92
      %p104 = scmp.eq.s32.totalorder %s19, 1
      %p105 = por %p103, %p104
      %p107 = scmp.ne.s32.totalorder %s92, %s106
      %p108 = scmp.eq.s32.totalorder %s19, 0
      %p109 = por %p107, %p108
      %s110 = ssub.s32 %s13, %s20
      %p111 = scmp.eq.s32.totalorder %s110, 0
      %s113 = sadd.s32 %s112, 1
      %s114 = scalar_select %p111, %s112, %s113
      %p117 = pneg %p111
      %p118 = scmp.eq.s32.totalorder %s13, 1
      %p119 = por %p117, %p118
      %p120 = scmp.ne.s32.totalorder %s112, %s115
      %p121 = scmp.eq.s32.totalorder %s13, 0
      %p122 = por %p120, %p121
      %p123 = scmp.ne.s32.totalorder %s112, %s115
      %p124 = scmp.eq.s32.totalorder %s18, 1
      %p125 = por %p123, %p124
      %p126 = scmp.ne.s32.totalorder %s115, %s116
      %p127 = scmp.eq.s32.totalorder %s18, 0
      %p128 = por %p126, %p127
      %p129 = scmp.ne.s32.totalorder %s115, %s116
      %p130 = scmp.eq.s32.totalorder %s19, 1
      %p131 = por %p129, %p130
      %p133 = scmp.ne.s32.totalorder %s116, %s132
      %p134 = scmp.eq.s32.totalorder %s19, 0
      %p135 = por %p133, %p134
      %p136 = scmp.le.s32.totalorder 1, %s13
      %p137 = scmp.lt.s32.totalorder %s13, 3
      %p138 = pnand %p136, %p137
      %p139 = pneg %p138
      // Predicated region
      $region9: #{upsample_forward.1} parent=5 // pred_check
        _
      $region10: #{upsample_forward.1} parent=5 // pred_check_branch
        %141 = sbr.rel (%p138) target = $region12
      $region11: #{upsample_forward.1} parent=5 // pred_region
        %s142 = ssub.s32 %s13, 1
        // Predicated region
        $region13: #{upsample_forward.1} parent=11 // pred_check
          %p143 = pneg %p60
        $region14: #{upsample_forward.1} parent=11 // pred_check_branch
          %145 = sbr.rel (%p143) target = $region16
        $region15: #{upsample_forward.1} parent=11 // pred_region
          _
        $region16: #{upsample_forward.1} parent=11 // pred_fallthru
          _
        // Predicated region
        $region17: #{upsample_forward.1} parent=11 // pred_check
          %p146 = pneg %p81
        $region18: #{upsample_forward.1} parent=11 // pred_check_branch
          %148 = sbr.rel (%p146) target = $region20
        $region19: #{upsample_forward.1} parent=11 // pred_region
          _
        $region20: #{upsample_forward.1} parent=11 // pred_fallthru
          _
        // Predicated region
        $region21: #{upsample_forward.1} parent=11 // pred_check
          %p149 = pneg %p102
        $region22: #{upsample_forward.1} parent=11 // pred_check_branch
          %151 = sbr.rel (%p149) target = $region24
        $region23: #{upsample_forward.1} parent=11 // pred_region
          _
        $region24: #{upsample_forward.1} parent=11 // pred_fallthru
          _
      $region12: #{upsample_forward.1} parent=5 // pred_fallthru
        _
      %p152 = scmp.lt.s32.totalorder %s13, 2
      // Predicated region
      $region25: #{upsample_forward.1} parent=5 // pred_check
        %p153 = pneg %p152
      $region26: #{upsample_forward.1} parent=5 // pred_check_branch
        %155 = sbr.rel (%p153) target = $region28
      $region27: #{upsample_forward.1} parent=5 // pred_region
        // Predicated region
        $region29: #{upsample_forward.1} parent=27 // pred_check
          %p156 = pneg %p33
        $region30: #{upsample_forward.1} parent=27 // pred_check_branch
          %158 = sbr.rel (%p156) target = $region32
        $region31: #{upsample_forward.1} parent=27 // pred_region
          %p159 = scmp.lt.s32.totalorder %s13, 1
          %s160 = scalar_select %p159, %s13, 1
          %s161 = smul.addr %s160, 2
          %s162 = smul.addr %s161, 8
          %s163 = scalar_lea.vmem %s0, %s162
        $region32: #{upsample_forward.1} parent=27 // pred_fallthru
          _
      $region28: #{upsample_forward.1} parent=5 // pred_fallthru
        _
      %p164 = scmp.le.s32.totalorder 1, %s13
      %p165 = scmp.lt.s32.totalorder %s13, 3
      %p166 = pnand %p164, %p165
      %p167 = pneg %p166
      // Predicated region
      $region33: #{upsample_forward.1} parent=5 // pred_check
        _
      $region34: #{upsample_forward.1} parent=5 // pred_check_branch
        %169 = sbr.rel (%p166) target = $region36
      $region35: #{upsample_forward.1} parent=5 // pred_region
        %s170 = ssub.s32 %s13, 1
        %p171 = scmp.lt.s32.totalorder %s18, 1
        %s172 = scalar_select %p171, %s18, 1
        %s173 = smul.addr %s172, 2
        %s174 = smul.addr %s173, 8
        %s175 = scalar_lea.vmem %s0, %s174
        %p176 = pneg %p39
        %p177 = pneg %p36
        %p178 = pneg %p60
        %p179 = pneg %p57
        %p180 = pneg %p81
        %p181 = pneg %p78
        %p182 = pneg %p102
        %p183 = pneg %p99
        %p184 = pneg %p128
        %p185 = pneg %p125
        %s186 = sand.u32 %s115, 1
        %s187 = scalar_lea.sflag [#allocation3], %s186
        %s188 = sand.u32 %s115, 1
        %s189 = smul.addr %s188, 256
        %s190 = scalar_lea.vmem [#allocation2], %s189
        %p191 = scmp.lt.s32.totalorder %s18, 1
        %s192 = scalar_select %p191, %s18, 1
        %s193 = smul.addr %s192, 2
        %s194 = smul.addr %s193, 8
        %s195 = scalar_lea.vmem %s0, %s194
        %v196 = vld [vmem:[%s1] sm:$0xff]
        %v197 = vld [vmem:[%s1 + $0x8] sm:$0xff]
        %v198 = vld [vmem:[%s1 + $0x10] sm:$0xff]
        %v199 = vld [vmem:[%s1 + $0x18] sm:$0xff]
        %v200 = vld [vmem:[%s1 + $0x20] sm:$0xff]
        %v201 = vld [vmem:[%s1 + $0x28] sm:$0xff]
        %v202 = vld [vmem:[%s1 + $0x30] sm:$0xff]
        %v203 = vld [vmem:[%s1 + $0x38] sm:$0xff]
        %v204 = vld [vmem:[%s1 + $0x40] sm:$0xff]
        %v205 = vld [vmem:[%s1 + $0x48] sm:$0xff]
        %v206 = vld [vmem:[%s1 + $0x50] sm:$0xff]
        %v207 = vld [vmem:[%s1 + $0x58] sm:$0xff]
        %v208 = vld [vmem:[%s1 + $0x60] sm:$0xff]
        %v209 = vld [vmem:[%s1 + $0x68] sm:$0xff]
        %v210 = vld [vmem:[%s1 + $0x70] sm:$0xff]
        %v211 = vld [vmem:[%s1 + $0x78] sm:$0xff]
        %v212 = vld [vmem:[%s1 + $0x80] sm:$0xff]
        %v213 = vld [vmem:[%s1 + $0x88] sm:$0xff]
        %v214 = vld [vmem:[%s1 + $0x90] sm:$0xff]
        %v215 = vld [vmem:[%s1 + $0x98] sm:$0xff]
        %v216 = vld [vmem:[%s1 + $0xa0] sm:$0xff]
        %v217 = vld [vmem:[%s1 + $0xa8] sm:$0xff]
        %v218 = vld [vmem:[%s1 + $0xb0] sm:$0xff]
        %v219 = vld [vmem:[%s1 + $0xb8] sm:$0xff]
        %v220 = vld [vmem:[%s1 + $0xc0] sm:$0xff]
        %v221 = vld [vmem:[%s1 + $0xc8] sm:$0xff]
        %v222 = vld [vmem:[%s1 + $0xd0] sm:$0xff]
        %v223 = vld [vmem:[%s1 + $0xd8] sm:$0xff]
        %v224 = vld [vmem:[%s1 + $0xe0] sm:$0xff]
        %v225 = vld [vmem:[%s1 + $0xe8] sm:$0xff]
        %v226 = vld [vmem:[%s1 + $0xf0] sm:$0xff]
        %v227 = vld [vmem:[%s1 + $0xf8] sm:$0xff]
        %v228 = vld [vmem:[%s2] sm:$0xff]
        %v229 = vld [vmem:[%s2 + $0x8] sm:$0xff]
        %v230 = vld [vmem:[%s2 + $0x10] sm:$0xff]
        %v231 = vld [vmem:[%s2 + $0x18] sm:$0xff]
        %v232 = vld [vmem:[%s3] sm:$0x3]
        %v234 = vlaneseq
        %v235 = vshrl.u32 %v234, 7
        %v236 = vsub.s32 0, %v235
        %v237 = vrot.slane %v232, %v236
        %v238 = vlaneseq
        %v239 = vshrl.u32 %v238, 7
        %v240 = vsub.s32 1, %v239
        %v241 = vrot.slane %v232, %v240
        %v244 = vld [vmem:[%s195] sm:$0xff]
        %v245 = vld [vmem:[%s195 + $0x8] sm:$0xff]
        %246 = vmatprep.subr.mxu0 %v197
        %247 = vmatpush1.msra.mxu0 %v196
        %248 = vmatprep.subr.mxu0 %v199
        %249 = vmatpush1.msra.mxu0 %v198
        %250 = vmatprep.subr.mxu0 %v201
        %251 = vmatpush1.msra.mxu0 %v200
        %252 = vmatprep.subr.mxu0 %v203
        %253 = vmatpush1.msra.mxu0 %v202
        %254 = vmatprep.subr.mxu0 %v205
        %255 = vmatpush1.msra.mxu0 %v204
        %256 = vmatprep.subr.mxu0 %v207
        %257 = vmatpush1.msra.mxu0 %v206
        %258 = vmatprep.subr.mxu0 %v209
        %259 = vmatpush1.msra.mxu0 %v208
        %260 = vmatprep.subr.mxu0 %v211
        %261 = vmatpush1.msra.mxu0 %v210
        %262 = vmatprep.subr.mxu0 %v213
        %263 = vmatpush1.msra.mxu0 %v212
        %264 = vmatprep.subr.mxu0 %v215
        %265 = vmatpush1.msra.mxu0 %v214
        %266 = vmatprep.subr.mxu0 %v217
        %267 = vmatpush1.msra.mxu0 %v216
        %268 = vmatprep.subr.mxu0 %v219
        %269 = vmatpush1.msra.mxu0 %v218
        %270 = vmatprep.subr.mxu0 %v221
        %271 = vmatpush1.msra.mxu0 %v220
        %272 = vmatprep.subr.mxu0 %v223
        %273 = vmatpush1.msra.mxu0 %v222
        %274 = vmatprep.subr.mxu0 %v225
        %275 = vmatpush1.msra.mxu0 %v224
        %276 = vmatprep.subr.mxu0 %v227
        %277 = vmatpush1.msra.mxu0 %v226
        %278 = vmatprep.subr.mxu0 0.0
        %279 = vmatpush1.msra.mxu0 0.0
        %280 = vmatprep.subr.mxu0 0.0
        %281 = vmatpush1.msra.mxu0 0.0
        %282 = vmatprep.subr.mxu0 0.0
        %283 = vmatpush1.msra.mxu0 0.0
        %284 = vmatprep.subr.mxu0 0.0
        %285 = vmatpush1.msra.mxu0 0.0
        %286 = vmatprep.subr.mxu0 0.0
        %287 = vmatpush1.msra.mxu0 0.0
        %288 = vmatprep.subr.mxu0 0.0
        %289 = vmatpush1.msra.mxu0 0.0
        %290 = vmatprep.subr.mxu0 0.0
        %291 = vmatpush1.msra.mxu0 0.0
        %292 = vmatprep.subr.mxu0 0.0
        %293 = vmatpush1.msra.mxu0 0.0
        %294 = vmatprep.subr.mxu0 0.0
        %295 = vmatpush1.msra.mxu0 0.0
        %296 = vmatprep.subr.mxu0 0.0
        %297 = vmatpush1.msra.mxu0 0.0
        %298 = vmatprep.subr.mxu0 0.0
        %299 = vmatpush1.msra.mxu0 0.0
        %300 = vmatprep.subr.mxu0 0.0
        %301 = vmatpush1.msra.mxu0 0.0
        %302 = vmatprep.subr.mxu0 0.0
        %303 = vmatpush1.msra.mxu0 0.0
        %304 = vmatprep.subr.mxu0 0.0
        %305 = vmatpush1.msra.mxu0 0.0
        %306 = vmatprep.subr.mxu0 0.0
        %307 = vmatpush1.msra.mxu0 0.0
        %308 = vmatprep.subr.mxu0 0.0
        %309 = vmatpush1.msra.mxu0 0.0
        %310 = vmatprep.mubr.f32.mxu0 0.0
        %311 = vmatmul.mubr.f32.gmra.mrb[0].mxu0 %v244
        %v312 = vpop.f32.mrb[0].mxu0
        %v313 = vadd.f32 0.0, %v312
        %v314 = vpop.f32.mrb[0].mxu0
        %v315 = vadd.f32 0.0, %v314
        %316 = vmatprep.mubr.f32.mxu0 0.0
        %317 = vmatmul.mubr.f32.gmra.mrb[0].mxu0 %v245
        %v318 = vpop.f32.mrb[0].mxu0
        %v319 = vadd.f32 0.0, %v318
        %v320 = vpop.f32.mrb[0].mxu0
        %v321 = vadd.f32 0.0, %v320
        %322 = vdwg.mxu0
        %vm323 = vcmask 130048
        %v325 = vsel %vm323, %v228, 0
        %v328 = vsel %vm323, %v229, 0
        %v331 = vsel %vm323, %v230, 0
        %v334 = vsel %vm323, %v231, 0
        %336 = vmatprep.subr.mxu0 %v315
        %337 = vmatpush1.msra.mxu0 %v313
        %338 = vmatprep.subr.mxu0 %v321
        %339 = vmatpush1.msra.mxu0 %v319
        %340 = vmatprep.subr.mxu0 0.0
        %341 = vmatpush1.msra.mxu0 0.0
        %342 = vmatprep.subr.mxu0 0.0
        %343 = vmatpush1.msra.mxu0 0.0
        %344 = vmatprep.subr.mxu0 0.0
        %345 = vmatpush1.msra.mxu0 0.0
        %346 = vmatprep.subr.mxu0 0.0
        %347 = vmatpush1.msra.mxu0 0.0
        %348 = vmatprep.subr.mxu0 0.0
        %349 = vmatpush1.msra.mxu0 0.0
        %350 = vmatprep.subr.mxu0 0.0
        %351 = vmatpush1.msra.mxu0 0.0
        %352 = vmatprep.subr.mxu0 0.0
        %353 = vmatpush1.msra.mxu0 0.0
        %354 = vmatprep.subr.mxu0 0.0
        %355 = vmatpush1.msra.mxu0 0.0
        %356 = vmatprep.subr.mxu0 0.0
        %357 = vmatpush1.msra.mxu0 0.0
        %358 = vmatprep.subr.mxu0 0.0
        %359 = vmatpush1.msra.mxu0 0.0
        %360 = vmatprep.subr.mxu0 0.0
        %361 = vmatpush1.msra.mxu0 0.0
        %362 = vmatprep.subr.mxu0 0.0
        %363 = vmatpush1.msra.mxu0 0.0
        %364 = vmatprep.subr.mxu0 0.0
        %365 = vmatpush1.msra.mxu0 0.0
        %366 = vmatprep.subr.mxu0 0.0
        %367 = vmatpush1.msra.mxu0 0.0
        %368 = vmatprep.subr.mxu0 0.0
        %369 = vmatpush1.msra.mxu0 0.0
        %370 = vmatprep.subr.mxu0 0.0
        %371 = vmatpush1.msra.mxu0 0.0
        %372 = vmatprep.subr.mxu0 0.0
        %373 = vmatpush1.msra.mxu0 0.0
        %374 = vmatprep.subr.mxu0 0.0
        %375 = vmatpush1.msra.mxu0 0.0
        %376 = vmatprep.subr.mxu0 0.0
        %377 = vmatpush1.msra.mxu0 0.0
        %378 = vmatprep.subr.mxu0 0.0
        %379 = vmatpush1.msra.mxu0 0.0
        %380 = vmatprep.subr.mxu0 0.0
        %381 = vmatpush1.msra.mxu0 0.0
        %382 = vmatprep.subr.mxu0 0.0
        %383 = vmatpush1.msra.mxu0 0.0
        %384 = vmatprep.subr.mxu0 0.0
        %385 = vmatpush1.msra.mxu0 0.0
        %386 = vmatprep.subr.mxu0 0.0
        %387 = vmatpush1.msra.mxu0 0.0
        %388 = vmatprep.subr.mxu0 0.0
        %389 = vmatpush1.msra.mxu0 0.0
        %390 = vmatprep.subr.mxu0 0.0
        %391 = vmatpush1.msra.mxu0 0.0
        %392 = vmatprep.subr.mxu0 0.0
        %393 = vmatpush1.msra.mxu0 0.0
        %394 = vmatprep.subr.mxu0 0.0
        %395 = vmatpush1.msra.mxu0 0.0
        %396 = vmatprep.subr.mxu0 0.0
        %397 = vmatpush1.msra.mxu0 0.0
        %398 = vmatprep.subr.mxu0 0.0
        %399 = vmatpush1.msra.mxu0 0.0
        %400 = vmatprep.mubr.f32.mxu0 0.0
        %401 = vmatmul.mubr.f32.gmra.mrb[0].mxu0 %v325
        %v402 = vpop.f32.mrb[0].mxu0
        %v403 = vadd.f32 %v237, %v402
        %v404 = vpop.f32.mrb[0].mxu0
        %v405 = vadd.f32 %v241, %v404
        %406 = vmatprep.mubr.f32.mxu0 0.0
        %407 = vmatmul.mubr.f32.gmra.mrb[0].mxu0 %v328
        %v408 = vpop.f32.mrb[0].mxu0
        %v409 = vadd.f32 %v237, %v408
        %v410 = vpop.f32.mrb[0].mxu0
        %v411 = vadd.f32 %v241, %v410
        %412 = vmatprep.mubr.f32.mxu0 0.0
        %413 = vmatmul.mubr.f32.gmra.mrb[0].mxu0 %v331
        %v414 = vpop.f32.mrb[0].mxu0
        %v415 = vadd.f32 %v237, %v414
        %v416 = vpop.f32.mrb[0].mxu0
        %v417 = vadd.f32 %v241, %v416
        %418 = vmatprep.mubr.f32.mxu0 0.0
        %419 = vmatmul.mubr.f32.gmra.mrb[0].mxu0 %v334
        %v420 = vpop.f32.mrb[0].mxu0
        %v421 = vadd.f32 %v237, %v420
        %v422 = vpop.f32.mrb[0].mxu0
        %v423 = vadd.f32 %v241, %v422
        %424 = vdwg.mxu0
        %vm425 = vcmask 261120
        %426 = vst.msk [vmem:[%s190] sm:$0xff] %vm425, %v403
        %427 = vst.msk [vmem:[%s190 + $0x8] sm:$0xff] %vm425, %v409
        %428 = vst.msk [vmem:[%s190 + $0x10] sm:$0xff] %vm425, %v415
        %429 = vst.msk [vmem:[%s190 + $0x18] sm:$0xff] %vm425, %v421
        %434 = vrot.lane.b32.xlu0 %v403, 96
        %v435 = vpop.permute.xlu0 %434
        %436 = vrot.lane.b32.xlu0 %v409, 96
        %v437 = vpop.permute.xlu0 %436
        %438 = vrot.lane.b32.xlu0 %v415, 96
        %v439 = vpop.permute.xlu0 %438
        %440 = vrot.lane.b32.xlu0 %v421, 96
        %v441 = vpop.permute.xlu0 %440
        %s446 = scalar_lea.vmem %s190, 32 [#allocation2]
        %447 = vst.msk [vmem:[%s446] sm:$0xff] %vm425, %v435
        %448 = vst.msk [vmem:[%s446 + $0x8] sm:$0xff] %vm425, %v437
        %449 = vst.msk [vmem:[%s446 + $0x10] sm:$0xff] %vm425, %v439
        %450 = vst.msk [vmem:[%s446 + $0x18] sm:$0xff] %vm425, %v441
        %451 = vrot.lane.b32.xlu0 %v403, 64
        %v452 = vpop.permute.xlu0 %451
        %453 = vrot.lane.b32.xlu0 %v409, 64
        %v454 = vpop.permute.xlu0 %453
        %455 = vrot.lane.b32.xlu0 %v415, 64
        %v456 = vpop.permute.xlu0 %455
        %457 = vrot.lane.b32.xlu0 %v421, 64
        %v458 = vpop.permute.xlu0 %457
        %s463 = scalar_lea.vmem %s190, 64 [#allocation2]
        %464 = vst.msk [vmem:[%s463] sm:$0xff] %vm425, %v452
        %465 = vst.msk [vmem:[%s463 + $0x8] sm:$0xff] %vm425, %v454
        %466 = vst.msk [vmem:[%s463 + $0x10] sm:$0xff] %vm425, %v456
        %467 = vst.msk [vmem:[%s463 + $0x18] sm:$0xff] %vm425, %v458
        %468 = vrot.lane.b32.xlu0 %v403, 32
        %v469 = vpop.permute.xlu0 %468
        %470 = vrot.lane.b32.xlu0 %v409, 32
        %v471 = vpop.permute.xlu0 %470
        %472 = vrot.lane.b32.xlu0 %v415, 32
        %v473 = vpop.permute.xlu0 %472
        %474 = vrot.lane.b32.xlu0 %v421, 32
        %v475 = vpop.permute.xlu0 %474
        %s480 = scalar_lea.vmem %s190, 96 [#allocation2]
        %481 = vst.msk [vmem:[%s480] sm:$0xff] %vm425, %v469
        %482 = vst.msk [vmem:[%s480 + $0x8] sm:$0xff] %vm425, %v471
        %483 = vst.msk [vmem:[%s480 + $0x10] sm:$0xff] %vm425, %v473
        %484 = vst.msk [vmem:[%s480 + $0x18] sm:$0xff] %vm425, %v475
        %s485 = scalar_lea.vmem %s190, 128 [#allocation2]
        %486 = vst.msk [vmem:[%s485] sm:$0xff] %vm425, %v405
        %487 = vst.msk [vmem:[%s485 + $0x8] sm:$0xff] %vm425, %v411
        %488 = vst.msk [vmem:[%s485 + $0x10] sm:$0xff] %vm425, %v417
        %489 = vst.msk [vmem:[%s485 + $0x18] sm:$0xff] %vm425, %v423
        %494 = vrot.lane.b32.xlu0 %v405, 96
        %v495 = vpop.permute.xlu0 %494
        %496 = vrot.lane.b32.xlu0 %v411, 96
        %v497 = vpop.permute.xlu0 %496
        %498 = vrot.lane.b32.xlu0 %v417, 96
        %v499 = vpop.permute.xlu0 %498
        %500 = vrot.lane.b32.xlu0 %v423, 96
        %v501 = vpop.permute.xlu0 %500
        %s506 = scalar_lea.vmem %s190, 160 [#allocation2]
        %507 = vst.msk [vmem:[%s506] sm:$0xff] %vm425, %v495
        %508 = vst.msk [vmem:[%s506 + $0x8] sm:$0xff] %vm425, %v497
        %509 = vst.msk [vmem:[%s506 + $0x10] sm:$0xff] %vm425, %v499
        %510 = vst.msk [vmem:[%s506 + $0x18] sm:$0xff] %vm425, %v501
        %511 = vrot.lane.b32.xlu0 %v405, 64
        %v512 = vpop.permute.xlu0 %511
        %513 = vrot.lane.b32.xlu0 %v411, 64
        %v514 = vpop.permute.xlu0 %513
        %515 = vrot.lane.b32.xlu0 %v417, 64
        %v516 = vpop.permute.xlu0 %515
        %517 = vrot.lane.b32.xlu0 %v423, 64
        %v518 = vpop.permute.xlu0 %517
        %s523 = scalar_lea.vmem %s190, 192 [#allocation2]
        %524 = vst.msk [vmem:[%s523] sm:$0xff] %vm425, %v512
        %525 = vst.msk [vmem:[%s523 + $0x8] sm:$0xff] %vm425, %v514
        %526 = vst.msk [vmem:[%s523 + $0x10] sm:$0xff] %vm425, %v516
        %527 = vst.msk [vmem:[%s523 + $0x18] sm:$0xff] %vm425, %v518
        %528 = vrot.lane.b32.xlu0 %v405, 32
        %v529 = vpop.permute.xlu0 %528
        %530 = vrot.lane.b32.xlu0 %v411, 32
        %v531 = vpop.permute.xlu0 %530
        %532 = vrot.lane.b32.xlu0 %v417, 32
        %v533 = vpop.permute.xlu0 %532
        %534 = vrot.lane.b32.xlu0 %v423, 32
        %v535 = vpop.permute.xlu0 %534
        %s540 = scalar_lea.vmem %s190, 224 [#allocation2]
        %541 = vst.msk [vmem:[%s540] sm:$0xff] %vm425, %v529
        %542 = vst.msk [vmem:[%s540 + $0x8] sm:$0xff] %vm425, %v531
        %543 = vst.msk [vmem:[%s540 + $0x10] sm:$0xff] %vm425, %v533
        %544 = vst.msk [vmem:[%s540 + $0x18] sm:$0xff] %vm425, %v535
        %s545 = sand.u32 %s115, 1
        %s546 = scalar_lea.sflag [#allocation3], %s545
        %s547 = sand.u32 %s115, 1
        %s548 = smul.addr %s547, 256
        %s549 = scalar_lea.vmem [#allocation2], %s548
        // Predicated region
        $region37: #{upsample_forward.1} parent=35 // pred_check
          %p550 = pneg %p125
        $region38: #{upsample_forward.1} parent=35 // pred_check_branch
          %552 = sbr.rel (%p550) target = $region40
        $region39: #{upsample_forward.1} parent=35 // pred_region
          %s554 = ssub.s32 4096, 4096
          %555 = vsyncadd %s546, %s554
          %s556 = smul.addr %s18, 32
          %s557 = smul.addr %s556, 128
          %s558 = scalar_lea.hbm %s4, %s557
          %s559 = sshll.u32 %s549, 4
          %s560 = int_to_ptr.vmem [resolvable:$true] %s559
          %565 = dma.vmem_to_hbm [thread:$0]  %s560, 4096, %s558, %s546, 128, 128, 8
        $region40: #{upsample_forward.1} parent=35 // pred_fallthru
          _
      $region36: #{upsample_forward.1} parent=5 // pred_fallthru
        _
      %p566 = scmp.le.s32.totalorder 2, %s13
      // Predicated region
      $region41: #{upsample_forward.1} parent=5 // pred_check
        %p567 = pneg %p566
      $region42: #{upsample_forward.1} parent=5 // pred_check_branch
        %569 = sbr.rel (%p567) target = $region44
      $region43: #{upsample_forward.1} parent=5 // pred_region
        %s570 = ssub.s32 %s13, 2
        // Predicated region
        $region45: #{upsample_forward.1} parent=43 // pred_check
          %p571 = pneg %p131
        $region46: #{upsample_forward.1} parent=43 // pred_check_branch
          %573 = sbr.rel (%p571) target = $region48
        $region47: #{upsample_forward.1} parent=43 // pred_region
          %s574 = sand.u32 %s116, 1
          %s575 = scalar_lea.sflag [#allocation3], %s574
          %s576 = sand.u32 %s116, 1
          %s577 = smul.addr %s576, 256
          %s578 = scalar_lea.vmem [#allocation2], %s577
          %579 = dma.done %s575, 4096
        $region48: #{upsample_forward.1} parent=43 // pred_fallthru
          _
      $region44: #{upsample_forward.1} parent=5 // pred_fallthru
        _
    $region6: #{upsample_forward.1} parent=1 // loop_footer
      %s17 = sadd.s32 1, %s13
    $region7: #{upsample_forward.1} parent=1 // loop_footer_branch
      %12 = sbr.rel target = $region3
    $region8: #{upsample_forward.1} parent=1 // loop_exit
      _
    %580 = vsyncpa [#allocation3], 1
    %s581 = scalar_lea.sflag [#allocation3], 1
    %582 = vsyncpa %s581, 1

</llo_original>
